<compile_context>
chip_gen: v7x
topology: tpu7x:2x2x1
jax: 0.10.0
libtpu: 0.0.40
codegen_flags: <defaults>
</compile_context>

<pallas_src>
import functools
import math

import jax
import jax.numpy as jnp
from jax.experimental import pallas as pl
from jax.experimental.pallas import tpu as pltpu

_LANE = 128
_SUBLANE = 8


def schema_attention_kernel(t_ref, o1_ref, o2_ref, w_ref, out_ref, *,
                            alpha, compute_dtype):
    Fout = out_ref.shape[1]
    w = w_ref[...]

    def project(ref):
        x = ref[...]
        if compute_dtype is not None:
            x = x.astype(compute_dtype)       # in-kernel cast (no extra HBM pass)
        # W_aug = [W | W@s1 | W@s2]: columns [:Fout] are the projected features,
        # columns Fout / Fout+1 are the logit partials h.s1 / h.s2.
        return jnp.dot(x, w, preferred_element_type=jnp.float32)

    h_t_full = project(t_ref)                 # (T, Fout+2) f32, SSA (no scratch)
    h_o1_full = project(o1_ref)
    h_o2_full = project(o2_ref)

    h_t = h_t_full[:, :Fout]
    h_o1 = h_o1_full[:, :Fout]
    h_o2 = h_o2_full[:, :Fout]

    base = h_t_full[:, Fout:Fout + 1]                 # h_t . s1        (T, 1)
    e0 = base + h_t_full[:, Fout + 1:Fout + 2]        # + h_t  . s2
    e1 = base + h_o1_full[:, Fout + 1:Fout + 2]       # + h_o1 . s2
    e2 = base + h_o2_full[:, Fout + 1:Fout + 2]       # + h_o2 . s2

    def lrelu(v):
        return jnp.where(v >= 0, v, alpha * v)

    e0, e1, e2 = lrelu(e0), lrelu(e1), lrelu(e2)

    # Numerically stable 3-way softmax; reciprocal on the otherwise-idle EUP.
    m = jnp.maximum(jnp.maximum(e0, e1), e2)
    p0 = jnp.exp(e0 - m)
    p1 = jnp.exp(e1 - m)
    p2 = jnp.exp(e2 - m)
    inv = pl.reciprocal(p0 + p1 + p2, approx=True)

    out_ref[...] = ((p0 * inv) * h_t + (p1 * inv) * h_o1
                    + (p2 * inv) * h_o2).astype(out_ref.dtype)


def _round_up(x, m):
    return ((x + m - 1) // m) * m


def _round_down(x, m):
    return (x // m) * m


def _choose_tiling(N, Fin, Fout, in_bytes):
    """Derive (tile_n, vmem_limit_bytes) from the generation's VMEM and Fin/Fout."""
    try:
        info = pltpu.get_tpu_info()
        vmem_cap = int(getattr(info, "vmem_capacity_bytes", 0)) or 64 * 1024 * 1024
    except Exception:
        vmem_cap = 64 * 1024 * 1024           # conservative (v7x per-TC VMEM)
    # Request half of physical VMEM (capped): 64 MiB on v5e/v6e, 32 MiB on v7x.
    vmem_limit = int(min(vmem_cap // 2, 64 * 1024 * 1024))

    # Double-buffered per-row working set: 3 inputs of width Fin (input dtype)
    # + one f32 output lane-padded to 128; plus the (tiny) resident weight.
    per_row = 2 * (3 * Fin * in_bytes + _round_up(Fout, _LANE) * 4)
    weight_bytes = 2 * Fin * _round_up(Fout + 2, _LANE) * 4
    budget = int(0.6 * vmem_limit) - weight_bytes     # headroom for compiler scratch
    tile_cap = max(_SUBLANE, _round_down(max(budget, per_row * _SUBLANE) // per_row,
                                         _SUBLANE))

    if N <= _SUBLANE:
        tile_n = N                              # tiny problem: single step
    elif N <= tile_cap:
        # VMEM would allow one step; still split into >=2 grid steps so both
        # v7x TensorCores get a block of the "parallel" row axis.
        tile_n = min(N, _round_up(pl.cdiv(N, 2), _SUBLANE))
    else:
        tile_n = tile_cap
    return tile_n, vmem_limit


def schema_attention(t_input, o1, o2, W, s, alpha, *, compute_dtype=None,
                     tile_n=None):
    """Pallas wrapper. t_input/o1/o2: (N, Fin); W: (Fin, Fout); s: (2*Fout, 1).

    compute_dtype=None runs the matmul in f32 (matches PyTorch); pass
    jnp.bfloat16 only when reduced-precision projection is acceptable.
    """
    N, Fin = t_input.shape
    Fout = W.shape[1]

    W32 = W.astype(jnp.float32)
    s1 = s[:Fout].astype(jnp.float32)            # (Fout, 1)
    s2 = s[Fout:].astype(jnp.float32)            # (Fout, 1)
    # Fold the attention vector into the projection: two extra columns carry
    # h.s1 and h.s2 straight out of the matmul.
    w_aug = jnp.concatenate([W32, W32 @ s1, W32 @ s2], axis=1)   # (Fin, Fout+2)
    if compute_dtype is not None:
        w_aug = w_aug.astype(compute_dtype)      # tiny; fine to cast in wrapper

    in_bytes = jnp.dtype(t_input.dtype).itemsize
    auto_tile, vmem_limit = _choose_tiling(N, Fin, Fout, in_bytes)
    if tile_n is None:
        tile_n = auto_tile
    grid = (pl.cdiv(N, tile_n),)

    x_spec = pl.BlockSpec((tile_n, Fin), lambda i: (i, 0))
    w_spec = pl.BlockSpec((Fin, Fout + 2), lambda i: (0, 0))     # resident weight
    out_spec = pl.BlockSpec((tile_n, Fout), lambda i: (i, 0))

    kernel = functools.partial(schema_attention_kernel, alpha=float(alpha),
                               compute_dtype=compute_dtype)

    return pl.pallas_call(
        kernel,
        out_shape=jax.ShapeDtypeStruct((N, Fout), jnp.float32),
        grid=grid,
        in_specs=[x_spec, x_spec, x_spec, w_spec],
        out_specs=out_spec,
        compiler_params=pltpu.CompilerParams(
            dimension_semantics=("parallel",),
            vmem_limit_bytes=vmem_limit,
        ),
    )(t_input, o1, o2, w_aug)


def schema_attention_ref(t_input, o_list, W, s, alpha):
    """Pure-JAX reference mirroring the PyTorch forward exactly (f32)."""
    N = t_input.shape[0]
    Fout = W.shape[1]
    h_t = t_input @ W
    h_os = [o @ W for o in o_list]
    rows = jnp.stack([jnp.concatenate([h_t, h], axis=1) for h in [h_t] + h_os],
                     axis=1).reshape((1 + len(o_list)) * N, 2 * Fout)
    e = (rows @ s).reshape(N, -1)
    e = jnp.where(e >= 0, e, alpha * e)
    attn = jax.nn.softmax(e, axis=1)[:, None, :]                 # (N, 1, 3)
    h_emb = jnp.stack([h_t] + h_os, axis=1)                      # (N, 3, Fout)
    return jnp.squeeze(attn @ h_emb, axis=1)


def xavier_uniform(key, shape, gain):
    fan_in, fan_out = shape[0], shape[1]
    bound = gain * math.sqrt(6.0 / (fan_in + fan_out))
    return jax.random.uniform(key, shape, jnp.float32, -bound, bound)


if __name__ == "__main__":
    in_features, out_features = 64, 32
    alpha = 0.2  # LeakyReLU negative slope
    # se_dropout is stored in __init__ but never applied in forward -> no-op.

    key = jax.random.PRNGKey(0)
    k_w, k_s, k_t, k_o1, k_o2 = jax.random.split(key, 5)

    W = xavier_uniform(k_w, (in_features, out_features), gain=1.414)
    s = xavier_uniform(k_s, (2 * out_features, 1), gain=1.414)

    # --- aligned case (N multiple of the sublane tile) -----------------------
    N = 16
    t_input = jax.random.normal(k_t, (N, in_features), jnp.float32)
    o1 = jax.random.normal(k_o1, (N, in_features), jnp.float32)
    o2 = jax.random.normal(k_o2, (N, in_features), jnp.float32)
    ref = schema_attention_ref(t_input, [o1, o2], W, s, alpha)

    out = jax.block_until_ready(schema_attention(t_input, o1, o2, W, s, alpha))
    assert out.shape == (N, out_features)
    assert jnp.allclose(out, ref, atol=1e-2, rtol=1e-2), "f32 mismatch vs reference"

    # --- ragged case (N not a multiple of tile_n; OOB rows are discarded) ----
    N2 = 40
    k_t2, k_o12, k_o22 = jax.random.split(jax.random.PRNGKey(1), 3)
    t2 = jax.random.normal(k_t2, (N2, in_features), jnp.float32)
    o12 = jax.random.normal(k_o12, (N2, in_features), jnp.float32)
    o22 = jax.random.normal(k_o22, (N2, in_features), jnp.float32)
    ref2 = schema_attention_ref(t2, [o12, o22], W, s, alpha)
    out2 = jax.block_until_ready(schema_attention(t2, o12, o22, W, s, alpha))
    assert out2.shape == (N2, out_features)
    assert jnp.all(jnp.isfinite(out2)), "non-finite values in ragged output"
    assert jnp.allclose(out2, ref2, atol=1e-2, rtol=1e-2), "ragged mismatch vs reference"

    # --- optional reduced-precision path (in-kernel bf16 cast) ---------------
    out_bf16 = jax.block_until_ready(
        schema_attention(t_input, o1, o2, W, s, alpha, compute_dtype=jnp.bfloat16))
    assert out_bf16.shape == (N, out_features)
    assert jnp.allclose(out_bf16, ref, atol=1e-1, rtol=1e-1), "bf16 mismatch vs reference"

    print("KERNEL_OK")
</pallas_src>

<mosaic_0001>
module attributes {stable_mosaic.version = 11 : i64} {
  func.func @schema_attention_kernel(%arg0: i32, %arg1: memref<8x64xf32, #tpu.memory_space<vmem>>, %arg2: memref<8x64xf32, #tpu.memory_space<vmem>>, %arg3: memref<8x64xf32, #tpu.memory_space<vmem>>, %arg4: memref<64x34xf32, #tpu.memory_space<vmem>>, %arg5: memref<8x32xf32, #tpu.memory_space<vmem>>) attributes {dimension_semantics = [#tpu.dimension_semantics<parallel>], iteration_bounds = array<i64: 2>, scalar_prefetch = 0 : i64, scratch_operands = 0 : i64, tpu.core_type = #tpu.core_type<tc>, window_params = [{transform_indices = @transform_0, window_bounds = array<i64: 8, 64>}, {transform_indices = @transform_1, window_bounds = array<i64: 8, 64>}, {transform_indices = @transform_2, window_bounds = array<i64: 8, 64>}, {pipeline_mode = #tpu.pipeline_mode<synchronous>, transform_indices = @transform_3, window_bounds = array<i64: 64, 34>}, {transform_indices = @transform_4, window_bounds = array<i64: 8, 32>}]} {
    %c0 = arith.constant 0 : index
    %c0_0 = arith.constant 0 : index
    %0 = vector.load %arg4[%c0, %c0_0] : memref<64x34xf32, #tpu.memory_space<vmem>>, vector<64x34xf32>
    %c0_1 = arith.constant 0 : index
    %c0_2 = arith.constant 0 : index
    %1 = vector.load %arg1[%c0_1, %c0_2] : memref<8x64xf32, #tpu.memory_space<vmem>>, vector<8x64xf32>
    %cst = arith.constant dense<0.000000e+00> : vector<8x34xf32>
    %2 = tpu.matmul %1, %0, %cst {dimension_numbers = #tpu.dot_dimension_numbers<[1], [0], [0], [1], [0, 0, 1, 1], [], []>} : vector<8x64xf32>, vector<64x34xf32>, vector<8x34xf32> -> vector<8x34xf32>
    %c0_3 = arith.constant 0 : index
    %c0_4 = arith.constant 0 : index
    %3 = vector.load %arg2[%c0_3, %c0_4] : memref<8x64xf32, #tpu.memory_space<vmem>>, vector<8x64xf32>
    %cst_5 = arith.constant dense<0.000000e+00> : vector<8x34xf32>
    %4 = tpu.matmul %3, %0, %cst_5 {dimension_numbers = #tpu.dot_dimension_numbers<[1], [0], [0], [1], [0, 0, 1, 1], [], []>} : vector<8x64xf32>, vector<64x34xf32>, vector<8x34xf32> -> vector<8x34xf32>
    %c0_6 = arith.constant 0 : index
    %c0_7 = arith.constant 0 : index
    %5 = vector.load %arg3[%c0_6, %c0_7] : memref<8x64xf32, #tpu.memory_space<vmem>>, vector<8x64xf32>
    %cst_8 = arith.constant dense<0.000000e+00> : vector<8x34xf32>
    %6 = tpu.matmul %5, %0, %cst_8 {dimension_numbers = #tpu.dot_dimension_numbers<[1], [0], [0], [1], [0, 0, 1, 1], [], []>} : vector<8x64xf32>, vector<64x34xf32>, vector<8x34xf32> -> vector<8x34xf32>
    %7 = vector.extract_strided_slice %2 {offsets = [0, 0], sizes = [8, 32], strides = [1, 1]} : vector<8x34xf32> to vector<8x32xf32>
    %8 = vector.extract_strided_slice %4 {offsets = [0, 0], sizes = [8, 32], strides = [1, 1]} : vector<8x34xf32> to vector<8x32xf32>
    %9 = vector.extract_strided_slice %6 {offsets = [0, 0], sizes = [8, 32], strides = [1, 1]} : vector<8x34xf32> to vector<8x32xf32>
    %10 = vector.extract_strided_slice %2 {offsets = [0, 32], sizes = [8, 1], strides = [1, 1]} : vector<8x34xf32> to vector<8x1xf32>
    %11 = vector.extract_strided_slice %2 {offsets = [0, 33], sizes = [8, 1], strides = [1, 1]} : vector<8x34xf32> to vector<8x1xf32>
    %12 = arith.addf %10, %11 : vector<8x1xf32>
    %13 = vector.extract_strided_slice %4 {offsets = [0, 33], sizes = [8, 1], strides = [1, 1]} : vector<8x34xf32> to vector<8x1xf32>
    %14 = arith.addf %10, %13 : vector<8x1xf32>
    %15 = vector.extract_strided_slice %6 {offsets = [0, 33], sizes = [8, 1], strides = [1, 1]} : vector<8x34xf32> to vector<8x1xf32>
    %16 = arith.addf %10, %15 : vector<8x1xf32>
    %cst_9 = arith.constant 0.000000e+00 : f32
    %17 = vector.broadcast %cst_9 : f32 to vector<8x1xf32>
    %18 = arith.cmpf oge, %12, %17 : vector<8x1xf32>
    %cst_10 = arith.constant 2.000000e-01 : f32
    %19 = vector.broadcast %cst_10 : f32 to vector<8x1xf32>
    %20 = arith.mulf %19, %12 : vector<8x1xf32>
    %21 = arith.select %18, %12, %20 : vector<8x1xi1>, vector<8x1xf32>
    %cst_11 = arith.constant 0.000000e+00 : f32
    %22 = vector.broadcast %cst_11 : f32 to vector<8x1xf32>
    %23 = arith.cmpf oge, %14, %22 : vector<8x1xf32>
    %cst_12 = arith.constant 2.000000e-01 : f32
    %24 = vector.broadcast %cst_12 : f32 to vector<8x1xf32>
    %25 = arith.mulf %24, %14 : vector<8x1xf32>
    %26 = arith.select %23, %14, %25 : vector<8x1xi1>, vector<8x1xf32>
    %cst_13 = arith.constant 0.000000e+00 : f32
    %27 = vector.broadcast %cst_13 : f32 to vector<8x1xf32>
    %28 = arith.cmpf oge, %16, %27 : vector<8x1xf32>
    %cst_14 = arith.constant 2.000000e-01 : f32
    %29 = vector.broadcast %cst_14 : f32 to vector<8x1xf32>
    %30 = arith.mulf %29, %16 : vector<8x1xf32>
    %31 = arith.select %28, %16, %30 : vector<8x1xi1>, vector<8x1xf32>
    %32 = arith.maximumf %21, %26 : vector<8x1xf32>
    %33 = arith.maximumf %32, %31 : vector<8x1xf32>
    %34 = arith.subf %21, %33 : vector<8x1xf32>
    %35 = math.exp %34 : vector<8x1xf32>
    %36 = arith.subf %26, %33 : vector<8x1xf32>
    %37 = math.exp %36 : vector<8x1xf32>
    %38 = arith.subf %31, %33 : vector<8x1xf32>
    %39 = math.exp %38 : vector<8x1xf32>
    %40 = arith.addf %35, %37 : vector<8x1xf32>
    %41 = arith.addf %40, %39 : vector<8x1xf32>
    %42 = tpu.reciprocal %41 {approx = true} : vector<8x1xf32> -> vector<8x1xf32>
    %43 = arith.mulf %35, %42 : vector<8x1xf32>
    %44 = vector.broadcast %43 : vector<8x1xf32> to vector<8x32xf32>
    %45 = arith.mulf %44, %7 : vector<8x32xf32>
    %46 = arith.mulf %37, %42 : vector<8x1xf32>
    %47 = vector.broadcast %46 : vector<8x1xf32> to vector<8x32xf32>
    %48 = arith.mulf %47, %8 : vector<8x32xf32>
    %49 = arith.addf %45, %48 : vector<8x32xf32>
    %50 = arith.mulf %39, %42 : vector<8x1xf32>
    %51 = vector.broadcast %50 : vector<8x1xf32> to vector<8x32xf32>
    %52 = arith.mulf %51, %9 : vector<8x32xf32>
    %53 = arith.addf %49, %52 : vector<8x32xf32>
    %c0_15 = arith.constant 0 : index
    %c0_16 = arith.constant 0 : index
    %54 = vector.load %arg5[%c0_15, %c0_16] : memref<8x32xf32, #tpu.memory_space<vmem>>, vector<8x32xf32>
    tpu.vector_store %arg5[%c0_15, %c0_16], %53 {strides = array<i32>} : memref<8x32xf32, #tpu.memory_space<vmem>>, vector<8x32xf32>,
    return
  }
  func.func @transform_0(%arg0: i32) -> (i32, i32) {
    %c0_i32 = arith.constant 0 : i32
    %c0_i32_0 = arith.constant 0 : i32
    return %arg0, %c0_i32 : i32, i32
  }
  func.func @transform_1(%arg0: i32) -> (i32, i32) {
    %c0_i32 = arith.constant 0 : i32
    %c0_i32_0 = arith.constant 0 : i32
    return %arg0, %c0_i32 : i32, i32
  }
  func.func @transform_2(%arg0: i32) -> (i32, i32) {
    %c0_i32 = arith.constant 0 : i32
    %c0_i32_0 = arith.constant 0 : i32
    return %arg0, %c0_i32 : i32, i32
  }
  func.func @transform_3(%arg0: i32) -> (i32, i32) {
    %c0_i32 = arith.constant 0 : i32
    %c0_i32_0 = arith.constant 0 : i32
    %c0_i32_1 = arith.constant 0 : i32
    return %c0_i32, %c0_i32_0 : i32, i32
  }
  func.func @transform_4(%arg0: i32) -> (i32, i32) {
    %c0_i32 = arith.constant 0 : i32
    %c0_i32_0 = arith.constant 0 : i32
    return %arg0, %c0_i32 : i32, i32
  }
}

</mosaic_0001>

<llo_original>
// kernel: tpu_custom_call.1
$region0: #{tpu_custom_call.1}
  #allocation0 [shape = 'u32[]', space=smem, size = 0x4, offset = 0x4, fixed_abs, tag = 'smem constant byte address 0x4 - core index']
  #allocation1 [shape = 'u32[144,128]{1,0:T(1,128)}', space=vmem, size = 0x12000, scoped, tag = 'internal scratch']
  %s0 = inlined_call_operand.vmem [shape: f32[16,64], index: 0, kind: input, shape index: {}]
  %s1 = inlined_call_operand.vmem [shape: f32[16,64], index: 1, kind: input, shape index: {}]
  %s2 = inlined_call_operand.vmem [shape: f32[16,64], index: 2, kind: input, shape index: {}]
  %s3 = inlined_call_operand.vmem [shape: f32[64,34], index: 3, kind: input, shape index: {}]
  %s4 = inlined_call_operand.hbm [shape: f32[16,32], index: 4, kind: output, shape index: {}]
  %s5 = sld [smem:[#allocation0]]
  $region49: #{tpu_custom_call.1} parent=0
    _
  %s7 = ssub.s32 1, %s5
  %s8 = scalar_select 0, %s7, %s5
  $region1: #{tpu_custom_call.1} parent=0
    #allocation2 [shape = 'u8[8192]{0}', space=vmem, size = 0x2000, scoped, tag = 'output window, operand 0']
    #allocation3 [shape = 's32[2]{0}', space=sflag, size = 0x8, scoped, tag = 'scoped memory for tpu_custom_call.1']
    %9 = vsyncpa [#allocation3], 0
    %s10 = scalar_lea.sflag [#allocation3], 1
    %11 = vsyncpa %s10, 0
    loop: start=0, step=1, limit=4
    $region2: #{tpu_custom_call.1} parent=1 // loop_pre_header
      _
    $region3: #{tpu_custom_call.1} parent=1 // loop_header
      %s13 = sphi 0, %s17
      %p14 = scmp.ge.s32.totalorder %s13, 4
      %s23 = sphi 0, %s25
      %s26 = sphi 0, %s23
      %s27 = sphi 0, %s26
      %s43 = sphi 0, %s27
      %s49 = sphi 0, %s51
      %s52 = sphi 0, %s49
      %s53 = sphi 0, %s52
      %s69 = sphi 0, %s53
      %s75 = sphi 0, %s77
      %s78 = sphi 0, %s75
      %s79 = sphi 0, %s78
      %s95 = sphi 0, %s79
      %s99 = sphi 0, %s99
      %s101 = sphi 0, %s99
      %s102 = sphi 0, %s101
      %s116 = sphi 0, %s102
      %s122 = sphi 0, %s124
      %s125 = sphi 0, %s122
      %s126 = sphi 0, %s125
      %s142 = sphi 0, %s126
    $region4: #{tpu_custom_call.1} parent=1 // loop_header_branch
      %16 = sbr.rel (%p14) target = $region8
    $region5: #{tpu_custom_call.1} parent=1 // loop_body
      %s18 = ssub.s32 %s13, 1
      %s19 = ssub.s32 %s13, 2
      %s20 = sadd.s32 %s13, 1
      %s21 = ssub.s32 %s13, %s20
      %p22 = scmp.eq.s32.totalorder %s21, 0
      %s24 = sadd.s32 %s23, 1
      %s25 = scalar_select %p22, %s23, %s24
      %p28 = pneg %p22
      %p29 = scmp.eq.s32.totalorder %s13, 1
      %p30 = por %p28, %p29
      %p31 = scmp.ne.s32.totalorder %s23, %s26
      %p32 = scmp.eq.s32.totalorder %s13, 0
      %p33 = por %p31, %p32
      %p34 = scmp.ne.s32.totalorder %s23, %s26
      %p35 = scmp.eq.s32.totalorder %s18, 1
      %p36 = por %p34, %p35
      %p37 = scmp.ne.s32.totalorder %s26, %s27
      %p38 = scmp.eq.s32.totalorder %s18, 0
      %p39 = por %p37, %p38
      %p40 = scmp.ne.s32.totalorder %s26, %s27
      %p41 = scmp.eq.s32.totalorder %s19, 1
      %p42 = por %p40, %p41
      %p44 = scmp.ne.s32.totalorder %s27, %s43
      %p45 = scmp.eq.s32.totalorder %s19, 0
      %p46 = por %p44, %p45
      %s47 = ssub.s32 %s13, %s20
      %p48 = scmp.eq.s32.totalorder %s47, 0
      %s50 = sadd.s32 %s49, 1
      %s51 = scalar_select %p48, %s49, %s50
      %p54 = pneg %p48
      %p55 = scmp.eq.s32.totalorder %s13, 1
      %p56 = por %p54, %p55
      %p57 = scmp.ne.s32.totalorder %s49, %s52
      %p58 = scmp.eq.s32.totalorder %s13, 0
      %p59 = por %p57, %p58
      %p60 = scmp.ne.s32.totalorder %s49, %s52
      %p61 = scmp.eq.s32.totalorder %s18, 1
      %p62 = por %p60, %p61
      %p63 = scmp.ne.s32.totalorder %s52, %s53
      %p64 = scmp.eq.s32.totalorder %s18, 0
      %p65 = por %p63, %p64
      %p66 = scmp.ne.s32.totalorder %s52, %s53
      %p67 = scmp.eq.s32.totalorder %s19, 1
      %p68 = por %p66, %p67
      %p70 = scmp.ne.s32.totalorder %s53, %s69
      %p71 = scmp.eq.s32.totalorder %s19, 0
      %p72 = por %p70, %p71
      %s73 = ssub.s32 %s13, %s20
      %p74 = scmp.eq.s32.totalorder %s73, 0
      %s76 = sadd.s32 %s75, 1
      %s77 = scalar_select %p74, %s75, %s76
      %p80 = pneg %p74
      %p81 = scmp.eq.s32.totalorder %s13, 1
      %p82 = por %p80, %p81
      %p83 = scmp.ne.s32.totalorder %s75, %s78
      %p84 = scmp.eq.s32.totalorder %s13, 0
      %p85 = por %p83, %p84
      %p86 = scmp.ne.s32.totalorder %s75, %s78
      %p87 = scmp.eq.s32.totalorder %s18, 1
      %p88 = por %p86, %p87
      %p89 = scmp.ne.s32.totalorder %s78, %s79
      %p90 = scmp.eq.s32.totalorder %s18, 0
      %p91 = por %p89, %p90
      %p92 = scmp.ne.s32.totalorder %s78, %s79
      %p93 = scmp.eq.s32.totalorder %s19, 1
      %p94 = por %p92, %p93
      %p96 = scmp.ne.s32.totalorder %s79, %s95
      %p97 = scmp.eq.s32.totalorder %s19, 0
      %p98 = por %p96, %p97
      %s100 = sadd.s32 %s99, 1
      %p103 = scmp.eq.s32.totalorder %s13, 1
      %p104 = scmp.ne.s32.totalorder %s99, %s101
      %p105 = scmp.eq.s32.totalorder %s13, 0
      %p106 = por %p104, %p105
      %p107 = scmp.ne.s32.totalorder %s99, %s101
      %p108 = scmp.eq.s32.totalorder %s18, 1
      %p109 = por %p107, %p108
      %p110 = scmp.ne.s32.totalorder %s101, %s102
      %p111 = scmp.eq.s32.totalorder %s18, 0
      %p112 = por %p110, %p111
      %p113 = scmp.ne.s32.totalorder %s101, %s102
      %p114 = scmp.eq.s32.totalorder %s19, 1
      %p115 = por %p113, %p114
      %p117 = scmp.ne.s32.totalorder %s102, %s116
      %p118 = scmp.eq.s32.totalorder %s19, 0
      %p119 = por %p117, %p118
      %s120 = ssub.s32 %s13, %s20
      %p121 = scmp.eq.s32.totalorder %s120, 0
      %s123 = sadd.s32 %s122, 1
      %s124 = scalar_select %p121, %s122, %s123
      %p127 = pneg %p121
      %p128 = scmp.eq.s32.totalorder %s13, 1
      %p129 = por %p127, %p128
      %p130 = scmp.ne.s32.totalorder %s122, %s125
      %p131 = scmp.eq.s32.totalorder %s13, 0
      %p132 = por %p130, %p131
      %p133 = scmp.ne.s32.totalorder %s122, %s125
      %p134 = scmp.eq.s32.totalorder %s18, 1
      %p135 = por %p133, %p134
      %p136 = scmp.ne.s32.totalorder %s125, %s126
      %p137 = scmp.eq.s32.totalorder %s18, 0
      %p138 = por %p136, %p137
      %p139 = scmp.ne.s32.totalorder %s125, %s126
      %p140 = scmp.eq.s32.totalorder %s19, 1
      %p141 = por %p139, %p140
      %p143 = scmp.ne.s32.totalorder %s126, %s142
      %p144 = scmp.eq.s32.totalorder %s19, 0
      %p145 = por %p143, %p144
      %p146 = scmp.le.s32.totalorder 1, %s13
      %p147 = scmp.lt.s32.totalorder %s13, 3
      %p148 = pnand %p146, %p147
      %p149 = pneg %p148
      // Predicated region
      $region9: #{tpu_custom_call.1} parent=5 // pred_check
        _
      $region10: #{tpu_custom_call.1} parent=5 // pred_check_branch
        %151 = sbr.rel (%p148) target = $region12
      $region11: #{tpu_custom_call.1} parent=5 // pred_region
        %s152 = ssub.s32 %s13, 1
        // Predicated region
        $region13: #{tpu_custom_call.1} parent=11 // pred_check
          %p153 = pneg %p112
        $region14: #{tpu_custom_call.1} parent=11 // pred_check_branch
          %155 = sbr.rel (%p153) target = $region16
        $region15: #{tpu_custom_call.1} parent=11 // pred_region
          _
        $region16: #{tpu_custom_call.1} parent=11 // pred_fallthru
          _
      $region12: #{tpu_custom_call.1} parent=5 // pred_fallthru
        _
      %p156 = scmp.lt.s32.totalorder %s13, 2
      // Predicated region
      $region17: #{tpu_custom_call.1} parent=5 // pred_check
        %p157 = pneg %p156
      $region18: #{tpu_custom_call.1} parent=5 // pred_check_branch
        %159 = sbr.rel (%p157) target = $region20
      $region19: #{tpu_custom_call.1} parent=5 // pred_region
        // Predicated region
        $region21: #{tpu_custom_call.1} parent=19 // pred_check
          %p160 = pneg %p33
        $region22: #{tpu_custom_call.1} parent=19 // pred_check_branch
          %162 = sbr.rel (%p160) target = $region24
        $region23: #{tpu_custom_call.1} parent=19 // pred_region
          %p163 = scmp.lt.s32.totalorder %s13, 1
          %s164 = scalar_select %p163, %s13, 1
          %s165 = smul.addr %s164, 8
          %s166 = scalar_lea.vmem %s0, %s165
        $region24: #{tpu_custom_call.1} parent=19 // pred_fallthru
          _
        // Predicated region
        $region25: #{tpu_custom_call.1} parent=19 // pred_check
          %p167 = pneg %p59
        $region26: #{tpu_custom_call.1} parent=19 // pred_check_branch
          %169 = sbr.rel (%p167) target = $region28
        $region27: #{tpu_custom_call.1} parent=19 // pred_region
          %p170 = scmp.lt.s32.totalorder %s13, 1
          %s171 = scalar_select %p170, %s13, 1
          %s172 = smul.addr %s171, 8
          %s173 = scalar_lea.vmem %s1, %s172
        $region28: #{tpu_custom_call.1} parent=19 // pred_fallthru
          _
        // Predicated region
        $region29: #{tpu_custom_call.1} parent=19 // pred_check
          %p174 = pneg %p85
        $region30: #{tpu_custom_call.1} parent=19 // pred_check_branch
          %176 = sbr.rel (%p174) target = $region32
        $region31: #{tpu_custom_call.1} parent=19 // pred_region
          %p177 = scmp.lt.s32.totalorder %s13, 1
          %s178 = scalar_select %p177, %s13, 1
          %s179 = smul.addr %s178, 8
          %s180 = scalar_lea.vmem %s2, %s179
        $region32: #{tpu_custom_call.1} parent=19 // pred_fallthru
          _
      $region20: #{tpu_custom_call.1} parent=5 // pred_fallthru
        _
      %p181 = scmp.le.s32.totalorder 1, %s13
      %p182 = scmp.lt.s32.totalorder %s13, 3
      %p183 = pnand %p181, %p182
      %p184 = pneg %p183
      // Predicated region
      $region33: #{tpu_custom_call.1} parent=5 // pred_check
        _
      $region34: #{tpu_custom_call.1} parent=5 // pred_check_branch
        %186 = sbr.rel (%p183) target = $region36
      $region35: #{tpu_custom_call.1} parent=5 // pred_region
        %s187 = ssub.s32 %s13, 1
        %p188 = scmp.lt.s32.totalorder %s18, 1
        %s189 = scalar_select %p188, %s18, 1
        %s190 = smul.addr %s189, 8
        %s191 = scalar_lea.vmem %s0, %s190
        %p192 = pneg %p39
        %p193 = pneg %p36
        %p194 = scmp.lt.s32.totalorder %s18, 1
        %s195 = scalar_select %p194, %s18, 1
        %s196 = smul.addr %s195, 8
        %s197 = scalar_lea.vmem %s1, %s196
        %p198 = pneg %p65
        %p199 = pneg %p62
        %p200 = scmp.lt.s32.totalorder %s18, 1
        %s201 = scalar_select %p200, %s18, 1
        %s202 = smul.addr %s201, 8
        %s203 = scalar_lea.vmem %s2, %s202
        %p204 = pneg %p91
        %p205 = pneg %p88
        %p206 = pneg %p112
        %p207 = pneg %p109
        %p208 = pneg %p138
        %p209 = pneg %p135
        %s210 = sand.u32 %s125, 1
        %s211 = scalar_lea.sflag [#allocation3], %s210
        %s212 = sand.u32 %s125, 1
        %s213 = smul.addr %s212, 8
        %s214 = scalar_lea.vmem [#allocation2], %s213
        %p215 = scmp.lt.s32.totalorder %s18, 1
        %s216 = scalar_select %p215, %s18, 1
        %s217 = smul.addr %s216, 8
        %s218 = scalar_lea.vmem %s0, %s217
        %p219 = scmp.lt.s32.totalorder %s18, 1
        %s220 = scalar_select %p219, %s18, 1
        %s221 = smul.addr %s220, 8
        %s222 = scalar_lea.vmem %s1, %s221
        %p223 = scmp.lt.s32.totalorder %s18, 1
        %s224 = scalar_select %p223, %s18, 1
        %s225 = smul.addr %s224, 8
        %s226 = scalar_lea.vmem %s2, %s225
        %v227 = vld [vmem:[%s3] sm:$0xff]
        %v228 = vld [vmem:[%s3 + $0x8] sm:$0xff]
        %v229 = vld [vmem:[%s3 + $0x10] sm:$0xff]
        %v230 = vld [vmem:[%s3 + $0x18] sm:$0xff]
        %v231 = vld [vmem:[%s3 + $0x20] sm:$0xff]
        %v232 = vld [vmem:[%s3 + $0x28] sm:$0xff]
        %v233 = vld [vmem:[%s3 + $0x30] sm:$0xff]
        %v234 = vld [vmem:[%s3 + $0x38] sm:$0xff]
        %v235 = vld [vmem:[%s218] sm:$0xff]
        %vm236 = vcmask 523264
        %v238 = vsel %vm236, %v235, 0
        %240 = vmatprep.subr.mxu0 0.0
        %241 = vmatpush1.msra.mxu0 %v227
        %242 = vmatprep.subr.mxu0 0.0
        %243 = vmatpush1.msra.mxu0 %v228
        %244 = vmatprep.subr.mxu0 0.0
        %245 = vmatpush1.msra.mxu0 %v229
        %246 = vmatprep.subr.mxu0 0.0
        %247 = vmatpush1.msra.mxu0 %v230
        %248 = vmatprep.subr.mxu0 0.0
        %249 = vmatpush1.msra.mxu0 %v231
        %250 = vmatprep.subr.mxu0 0.0
        %251 = vmatpush1.msra.mxu0 %v232
        %252 = vmatprep.subr.mxu0 0.0
        %253 = vmatpush1.msra.mxu0 %v233
        %254 = vmatprep.subr.mxu0 0.0
        %255 = vmatpush1.msra.mxu0 %v234
        %256 = vmatprep.subr.mxu0 0.0
        %257 = vmatpush1.msra.mxu0 0.0
        %258 = vmatprep.subr.mxu0 0.0
        %259 = vmatpush1.msra.mxu0 0.0
        %260 = vmatprep.subr.mxu0 0.0
        %261 = vmatpush1.msra.mxu0 0.0
        %262 = vmatprep.subr.mxu0 0.0
        %263 = vmatpush1.msra.mxu0 0.0
        %264 = vmatprep.subr.mxu0 0.0
        %265 = vmatpush1.msra.mxu0 0.0
        %266 = vmatprep.subr.mxu0 0.0
        %267 = vmatpush1.msra.mxu0 0.0
        %268 = vmatprep.subr.mxu0 0.0
        %269 = vmatpush1.msra.mxu0 0.0
        %270 = vmatprep.subr.mxu0 0.0
        %271 = vmatpush1.msra.mxu0 0.0
        %272 = vmatprep.subr.mxu0 0.0
        %273 = vmatpush1.msra.mxu0 0.0
        %274 = vmatprep.subr.mxu0 0.0
        %275 = vmatpush1.msra.mxu0 0.0
        %276 = vmatprep.subr.mxu0 0.0
        %277 = vmatpush1.msra.mxu0 0.0
        %278 = vmatprep.subr.mxu0 0.0
        %279 = vmatpush1.msra.mxu0 0.0
        %280 = vmatprep.subr.mxu0 0.0
        %281 = vmatpush1.msra.mxu0 0.0
        %282 = vmatprep.subr.mxu0 0.0
        %283 = vmatpush1.msra.mxu0 0.0
        %284 = vmatprep.subr.mxu0 0.0
        %285 = vmatpush1.msra.mxu0 0.0
        %286 = vmatprep.subr.mxu0 0.0
        %287 = vmatpush1.msra.mxu0 0.0
        %288 = vmatprep.subr.mxu0 0.0
        %289 = vmatpush1.msra.mxu0 0.0
        %290 = vmatprep.subr.mxu0 0.0
        %291 = vmatpush1.msra.mxu0 0.0
        %292 = vmatprep.subr.mxu0 0.0
        %293 = vmatpush1.msra.mxu0 0.0
        %294 = vmatprep.subr.mxu0 0.0
        %295 = vmatpush1.msra.mxu0 0.0
        %296 = vmatprep.subr.mxu0 0.0
        %297 = vmatpush1.msra.mxu0 0.0
        %298 = vmatprep.subr.mxu0 0.0
        %299 = vmatpush1.msra.mxu0 0.0
        %300 = vmatprep.subr.mxu0 0.0
        %301 = vmatpush1.msra.mxu0 0.0
        %302 = vmatprep.subr.mxu0 0.0
        %303 = vmatpush1.msra.mxu0 0.0
        %304 = vmatprep.mubr.f32.mxu0 0.0
        %305 = vmatmul.mubr.f32.gmra.mrb[0].mxu0 %v238
        %v306 = vpop.f32.mrb[0].mxu0
        %v307 = vadd.f32 0.0, %v306
        %v308 = vpop.f32.mrb[0].mxu0
        %309 = vdwg.mxu0
        %v310 = vld [vmem:[%s222] sm:$0xff]
        %v312 = vsel %vm236, %v310, 0
        %314 = vmatprep.subr.mxu0 0.0
        %315 = vmatpush1.msra.mxu0 %v227
        %316 = vmatprep.subr.mxu0 0.0
        %317 = vmatpush1.msra.mxu0 %v228
        %318 = vmatprep.subr.mxu0 0.0
        %319 = vmatpush1.msra.mxu0 %v229
        %320 = vmatprep.subr.mxu0 0.0
        %321 = vmatpush1.msra.mxu0 %v230
        %322 = vmatprep.subr.mxu0 0.0
        %323 = vmatpush1.msra.mxu0 %v231
        %324 = vmatprep.subr.mxu0 0.0
        %325 = vmatpush1.msra.mxu0 %v232
        %326 = vmatprep.subr.mxu0 0.0
        %327 = vmatpush1.msra.mxu0 %v233
        %328 = vmatprep.subr.mxu0 0.0
        %329 = vmatpush1.msra.mxu0 %v234
        %330 = vmatprep.subr.mxu0 0.0
        %331 = vmatpush1.msra.mxu0 0.0
        %332 = vmatprep.subr.mxu0 0.0
        %333 = vmatpush1.msra.mxu0 0.0
        %334 = vmatprep.subr.mxu0 0.0
        %335 = vmatpush1.msra.mxu0 0.0
        %336 = vmatprep.subr.mxu0 0.0
        %337 = vmatpush1.msra.mxu0 0.0
        %338 = vmatprep.subr.mxu0 0.0
        %339 = vmatpush1.msra.mxu0 0.0
        %340 = vmatprep.subr.mxu0 0.0
        %341 = vmatpush1.msra.mxu0 0.0
        %342 = vmatprep.subr.mxu0 0.0
        %343 = vmatpush1.msra.mxu0 0.0
        %344 = vmatprep.subr.mxu0 0.0
        %345 = vmatpush1.msra.mxu0 0.0
        %346 = vmatprep.subr.mxu0 0.0
        %347 = vmatpush1.msra.mxu0 0.0
        %348 = vmatprep.subr.mxu0 0.0
        %349 = vmatpush1.msra.mxu0 0.0
        %350 = vmatprep.subr.mxu0 0.0
        %351 = vmatpush1.msra.mxu0 0.0
        %352 = vmatprep.subr.mxu0 0.0
        %353 = vmatpush1.msra.mxu0 0.0
        %354 = vmatprep.subr.mxu0 0.0
        %355 = vmatpush1.msra.mxu0 0.0
        %356 = vmatprep.subr.mxu0 0.0
        %357 = vmatpush1.msra.mxu0 0.0
        %358 = vmatprep.subr.mxu0 0.0
        %359 = vmatpush1.msra.mxu0 0.0
        %360 = vmatprep.subr.mxu0 0.0
        %361 = vmatpush1.msra.mxu0 0.0
        %362 = vmatprep.subr.mxu0 0.0
        %363 = vmatpush1.msra.mxu0 0.0
        %364 = vmatprep.subr.mxu0 0.0
        %365 = vmatpush1.msra.mxu0 0.0
        %366 = vmatprep.subr.mxu0 0.0
        %367 = vmatpush1.msra.mxu0 0.0
        %368 = vmatprep.subr.mxu0 0.0
        %369 = vmatpush1.msra.mxu0 0.0
        %370 = vmatprep.subr.mxu0 0.0
        %371 = vmatpush1.msra.mxu0 0.0
        %372 = vmatprep.subr.mxu0 0.0
        %373 = vmatpush1.msra.mxu0 0.0
        %374 = vmatprep.subr.mxu0 0.0
        %375 = vmatpush1.msra.mxu0 0.0
        %376 = vmatprep.subr.mxu0 0.0
        %377 = vmatpush1.msra.mxu0 0.0
        %378 = vmatprep.mubr.f32.mxu0 0.0
        %379 = vmatmul.mubr.f32.gmra.mrb[0].mxu0 %v312
        %v380 = vpop.f32.mrb[0].mxu0
        %v381 = vadd.f32 0.0, %v380
        %v382 = vpop.f32.mrb[0].mxu0
        %383 = vdwg.mxu0
        %v384 = vld [vmem:[%s226] sm:$0xff]
        %v386 = vsel %vm236, %v384, 0
        %388 = vmatprep.subr.mxu0 0.0
        %389 = vmatpush1.msra.mxu0 %v227
        %390 = vmatprep.subr.mxu0 0.0
        %391 = vmatpush1.msra.mxu0 %v228
        %392 = vmatprep.subr.mxu0 0.0
        %393 = vmatpush1.msra.mxu0 %v229
        %394 = vmatprep.subr.mxu0 0.0
        %395 = vmatpush1.msra.mxu0 %v230
        %396 = vmatprep.subr.mxu0 0.0
        %397 = vmatpush1.msra.mxu0 %v231
        %398 = vmatprep.subr.mxu0 0.0
        %399 = vmatpush1.msra.mxu0 %v232
        %400 = vmatprep.subr.mxu0 0.0
        %401 = vmatpush1.msra.mxu0 %v233
        %402 = vmatprep.subr.mxu0 0.0
        %403 = vmatpush1.msra.mxu0 %v234
        %404 = vmatprep.subr.mxu0 0.0
        %405 = vmatpush1.msra.mxu0 0.0
        %406 = vmatprep.subr.mxu0 0.0
        %407 = vmatpush1.msra.mxu0 0.0
        %408 = vmatprep.subr.mxu0 0.0
        %409 = vmatpush1.msra.mxu0 0.0
        %410 = vmatprep.subr.mxu0 0.0
        %411 = vmatpush1.msra.mxu0 0.0
        %412 = vmatprep.subr.mxu0 0.0
        %413 = vmatpush1.msra.mxu0 0.0
        %414 = vmatprep.subr.mxu0 0.0
        %415 = vmatpush1.msra.mxu0 0.0
        %416 = vmatprep.subr.mxu0 0.0
        %417 = vmatpush1.msra.mxu0 0.0
        %418 = vmatprep.subr.mxu0 0.0
        %419 = vmatpush1.msra.mxu0 0.0
        %420 = vmatprep.subr.mxu0 0.0
        %421 = vmatpush1.msra.mxu0 0.0
        %422 = vmatprep.subr.mxu0 0.0
        %423 = vmatpush1.msra.mxu0 0.0
        %424 = vmatprep.subr.mxu0 0.0
        %425 = vmatpush1.msra.mxu0 0.0
        %426 = vmatprep.subr.mxu0 0.0
        %427 = vmatpush1.msra.mxu0 0.0
        %428 = vmatprep.subr.mxu0 0.0
        %429 = vmatpush1.msra.mxu0 0.0
        %430 = vmatprep.subr.mxu0 0.0
        %431 = vmatpush1.msra.mxu0 0.0
        %432 = vmatprep.subr.mxu0 0.0
        %433 = vmatpush1.msra.mxu0 0.0
        %434 = vmatprep.subr.mxu0 0.0
        %435 = vmatpush1.msra.mxu0 0.0
        %436 = vmatprep.subr.mxu0 0.0
        %437 = vmatpush1.msra.mxu0 0.0
        %438 = vmatprep.subr.mxu0 0.0
        %439 = vmatpush1.msra.mxu0 0.0
        %440 = vmatprep.subr.mxu0 0.0
        %441 = vmatpush1.msra.mxu0 0.0
        %442 = vmatprep.subr.mxu0 0.0
        %443 = vmatpush1.msra.mxu0 0.0
        %444 = vmatprep.subr.mxu0 0.0
        %445 = vmatpush1.msra.mxu0 0.0
        %446 = vmatprep.subr.mxu0 0.0
        %447 = vmatpush1.msra.mxu0 0.0
        %448 = vmatprep.subr.mxu0 0.0
        %449 = vmatpush1.msra.mxu0 0.0
        %450 = vmatprep.subr.mxu0 0.0
        %451 = vmatpush1.msra.mxu0 0.0
        %452 = vmatprep.mubr.f32.mxu0 0.0
        %453 = vmatmul.mubr.f32.gmra.mrb[0].mxu0 %v386
        %v454 = vpop.f32.mrb[0].mxu0
        %v455 = vadd.f32 0.0, %v454
        %v456 = vpop.f32.mrb[0].mxu0
        %457 = vdwg.mxu0
        %459 = vrot.lane.b32.xlu0 %v307, 127
        %v460 = vpop.permute.xlu0 %459
        %v462 = vadd.f32 %v307, %v460
        %464 = vrot.lane.b32.xlu0 %v381, 127
        %v465 = vpop.permute.xlu0 %464
        %v467 = vadd.f32 %v307, %v465
        %469 = vrot.lane.b32.xlu0 %v455, 127
        %v470 = vpop.permute.xlu0 %469
        %v472 = vadd.f32 %v307, %v470
        %vm473 = vcmp.ge.f32.partialorder %v462, 0.0
        %v474 = vmul.f32 %v462, 0.2
        %v475 = vsel %vm473, %v462, %v474
        %vm476 = vcmp.ge.f32.partialorder %v467, 0.0
        %v477 = vmul.f32 %v467, 0.2
        %v478 = vsel %vm476, %v467, %v477
        %vm479 = vcmp.ge.f32.partialorder %v472, 0.0
        %v480 = vmul.f32 %v472, 0.2
        %v481 = vsel %vm479, %v472, %v480
        %v482 = vmax.f32 %v475, %v478
        %v483 = vmax.f32 %v482, %v481
        %v484 = vsub.f32 %v475, %v483
        %v485 = vmul.f32 %v484, 1.442695
        %v486 = vpow.pop %v485
        %v487 = vsub.f32 %v478, %v483
        %v488 = vmul.f32 %v487, 1.442695
        %v489 = vpow.pop %v488
        %v490 = vsub.f32 %v481, %v483
        %v491 = vmul.f32 %v490, 1.442695
        %v492 = vpow.pop %v491
        %v493 = vadd.f32 %v486, %v489
        %v494 = vadd.f32 %v493, %v492
        %v495 = vrcp.pop %v494
        %v496 = vmul.f32 %v486, %v495
        %498 = vset.pattern.permute.xlu0 32
        %499 = vperm.xlu0 %498, %v496
        %v500 = vpop.permute.xlu0 %499
        %v502 = vmul.f32 %v500, %v307
        %v503 = vmul.f32 %v489, %v495
        %505 = vset.pattern.permute.xlu0 32
        %506 = vperm.xlu0 %505, %v503
        %v507 = vpop.permute.xlu0 %506
        %v509 = vmul.f32 %v507, %v381
        %v510 = vadd.f32 %v502, %v509
        %v511 = vmul.f32 %v492, %v495
        %513 = vset.pattern.permute.xlu0 32
        %514 = vperm.xlu0 %513, %v511
        %v515 = vpop.permute.xlu0 %514
        %v517 = vmul.f32 %v515, %v455
        %v518 = vadd.f32 %v510, %v517
        %vm519 = vcmask 261120
        %520 = vst.msk [vmem:[%s214] sm:$0xff] %vm519, %v518
        %s521 = sand.u32 %s125, 1
        %s522 = scalar_lea.sflag [#allocation3], %s521
        %s523 = sand.u32 %s125, 1
        %s524 = smul.addr %s523, 8
        %s525 = scalar_lea.vmem [#allocation2], %s524
        // Predicated region
        $region37: #{tpu_custom_call.1} parent=35 // pred_check
          %p526 = pneg %p135
        $region38: #{tpu_custom_call.1} parent=35 // pred_check_branch
          %528 = sbr.rel (%p526) target = $region40
        $region39: #{tpu_custom_call.1} parent=35 // pred_region
          %s530 = ssub.s32 128, 128
          %531 = vsyncadd %s522, %s530
          %s532 = smul.addr %s18, 128
          %s533 = scalar_lea.hbm %s4, %s532
          %s535 = sshll.u32 %s525, 4
          %s536 = int_to_ptr.vmem [resolvable:$true] %s535
          %538 = dma.vmem_to_hbm [thread:$0]  %s536, 128, %s533, %s522
        $region40: #{tpu_custom_call.1} parent=35 // pred_fallthru
          _
      $region36: #{tpu_custom_call.1} parent=5 // pred_fallthru
        _
      %p539 = scmp.le.s32.totalorder 2, %s13
      // Predicated region
      $region41: #{tpu_custom_call.1} parent=5 // pred_check
        %p540 = pneg %p539
      $region42: #{tpu_custom_call.1} parent=5 // pred_check_branch
        %542 = sbr.rel (%p540) target = $region44
      $region43: #{tpu_custom_call.1} parent=5 // pred_region
        %s543 = ssub.s32 %s13, 2
        // Predicated region
        $region45: #{tpu_custom_call.1} parent=43 // pred_check
          %p544 = pneg %p141
        $region46: #{tpu_custom_call.1} parent=43 // pred_check_branch
          %546 = sbr.rel (%p544) target = $region48
        $region47: #{tpu_custom_call.1} parent=43 // pred_region
          %s547 = sand.u32 %s126, 1
          %s548 = scalar_lea.sflag [#allocation3], %s547
          %s549 = sand.u32 %s126, 1
          %s550 = smul.addr %s549, 8
          %s551 = scalar_lea.vmem [#allocation2], %s550
          %552 = dma.done %s548, 128
        $region48: #{tpu_custom_call.1} parent=43 // pred_fallthru
          _
      $region44: #{tpu_custom_call.1} parent=5 // pred_fallthru
        _
    $region6: #{tpu_custom_call.1} parent=1 // loop_footer
      %s17 = sadd.s32 1, %s13
    $region7: #{tpu_custom_call.1} parent=1 // loop_footer_branch
      %12 = sbr.rel target = $region3
    $region8: #{tpu_custom_call.1} parent=1 // loop_exit
      _
    %553 = vsyncpa [#allocation3], 1
    %s554 = scalar_lea.sflag [#allocation3], 1
    %555 = vsyncpa %s554, 1

</llo_original>
